<compile_context>
chip_gen: v6e
topology: v6e:2x2x1
jax: 0.10.0
libtpu: 0.0.40
codegen_flags: <defaults>
</compile_context>

<pallas_src>
import jax
import jax.numpy as jnp
from jax import lax
from jax.experimental import pallas as pl
from jax.experimental.pallas import tpu as pltpu

Q1 = 0.1
Q9 = 1.0 - Q1
LANES = 128
SUBLANES = 8


def _round_up(x, m):
    return (x + m - 1) // m * m


def _cdiv(a, b):
    return (a + b - 1) // b


def _fused_pinball(o, t, v):
    # loss_10 + loss_90 == 0.5*(|d+v| + |d-v|) - (1 - 2*q1)*v,   d = t - o.
    d = t - o
    return 0.5 * (jnp.abs(d + v) + jnp.abs(d - v)) - (1.0 - 2.0 * Q1) * v


def _make_pinball_kernel(steps, tile_rows, rows_valid, need_mask):
    full_blocks = rows_valid // tile_rows   # blocks containing no invalid rows

    def kernel(o_ref, t_ref, v_ref, sum_ref):
        i = pl.program_id(1)

        @pl.when(i == 0)
        def _():
            sum_ref[...] = jnp.zeros_like(sum_ref)

        o = o_ref[...].astype(jnp.float32)
        t = t_ref[...].astype(jnp.float32)
        v = v_ref[...].astype(jnp.float32)
        tile = _fused_pinball(o, t, v)

        def accumulate(x):
            # Fold sublanes into the resident (8,128) accumulator (VALU adds);
            # the tiny cross-lane/sublane reduce happens once in the wrapper.
            sum_ref[...] += jnp.sum(x.reshape(-1, SUBLANES, LANES), axis=0)

        if not need_mask:
            accumulate(tile)
        else:
            # Un-clamped block index of this grid point.
            b = pl.program_id(0) * steps + i

            @pl.when(b < full_blocks)
            def _():
                accumulate(tile)

            @pl.when(b >= full_blocks)
            def _():
                # Partial (or grid-padding duplicate) block: rows beyond the
                # valid range hold undefined data -> zero them before summing.
                row = (b * tile_rows
                       + lax.broadcasted_iota(jnp.int32, tile.shape, 0))
                accumulate(jnp.where(row < rows_valid, tile, 0.0))

    return kernel


def _default_num_shards():
    # The 2-wide "parallel" shard axis only pays off on dual-TensorCore chips
    # (v7x); on single-TC v5e/v6e it just adds grid steps and padding.
    try:
        kind = jax.devices()[0].device_kind.lower()
    except Exception:
        return 1
    return 2 if ("v7" in kind or "7x" in kind) else 1


def pinball_loss(output_o, target_o, var_o, *, tile_rows=2048, num_shards=None):
    assert output_o.shape == target_o.shape == var_o.shape
    n_total = output_o.size
    assert n_total > 0

    o_flat = output_o.reshape(-1)
    t_flat = target_o.reshape(-1)
    v_flat = var_o.reshape(-1)

    rows_full = n_total // LANES       # complete 128-lane rows
    n_main = rows_full * LANES         # elements handled by the kernel

    total = jnp.zeros((), jnp.float32)

    if rows_full >= SUBLANES:
        num_shards_eff = (_default_num_shards() if num_shards is None
                          else int(num_shards))
        if rows_full < 2 * SUBLANES * num_shards_eff:
            num_shards_eff = 1

        rows_per_shard = _cdiv(rows_full, num_shards_eff)
        steps = _cdiv(rows_per_shard, max(tile_rows, SUBLANES))
        tile_rows_eff = _round_up(_cdiv(rows_per_shard, steps), SUBLANES)
        tile_rows_eff = min(tile_rows_eff, (rows_full // SUBLANES) * SUBLANES)
        blocks_total = _cdiv(rows_full, tile_rows_eff)
        steps = _cdiv(blocks_total, num_shards_eff)

        need_mask = (num_shards_eff * steps * tile_rows_eff != rows_full)
        need_clamp = (num_shards_eff * steps != blocks_total)
        last_block = blocks_total - 1

        if need_clamp:
            # Grid-padding points re-read the last block; their contribution
            # is removed by the in-kernel mask (their rows are all >= valid).
            def idx_map(s, i):
                return (jnp.minimum(s * steps + i, last_block), 0)
        else:
            def idx_map(s, i):
                return (s * steps + i, 0)

        in_spec = pl.BlockSpec((tile_rows_eff, LANES), idx_map)

        def to_slab(flat):
            pre = flat if n_main == n_total else flat[:n_main]
            return pre.reshape(rows_full, LANES)

        itemsize = jnp.dtype(output_o.dtype).itemsize
        cost = pl.CostEstimate(
            flops=10 * n_main,
            transcendentals=0,
            bytes_accessed=3 * n_main * itemsize
            + num_shards_eff * SUBLANES * LANES * 4,
        )

        partials = pl.pallas_call(
            _make_pinball_kernel(steps, tile_rows_eff, rows_full, need_mask),
            out_shape=jax.ShapeDtypeStruct(
                (num_shards_eff * SUBLANES, LANES), jnp.float32),
            grid_spec=pltpu.PrefetchScalarGridSpec(
                num_scalar_prefetch=0,
                grid=(num_shards_eff, steps),
                in_specs=[in_spec, in_spec, in_spec],
                out_specs=pl.BlockSpec((SUBLANES, LANES), lambda s, i: (s, 0)),
            ),
            compiler_params=pltpu.CompilerParams(
                dimension_semantics=("parallel", "arbitrary"),
            ),
            cost_estimate=cost,
        )(to_slab(o_flat), to_slab(t_flat), to_slab(v_flat))

        total = total + jnp.sum(partials, dtype=jnp.float32)

    if n_main < n_total or rows_full < SUBLANES:
        # Ragged (<128-element) tail, or tiny (<1024-element) input: plain jnp.
        if rows_full >= SUBLANES:
            o_t, t_t, v_t = o_flat[n_main:], t_flat[n_main:], v_flat[n_main:]
        else:
            o_t, t_t, v_t = o_flat, t_flat, v_flat
        total = total + jnp.sum(
            _fused_pinball(o_t.astype(jnp.float32),
                           t_t.astype(jnp.float32),
                           v_t.astype(jnp.float32)))

    # mean(loss_10) + mean(loss_90) == sum(loss_10 + loss_90) / n.
    return total / jnp.float32(n_total)


def pinball_loss_ref(output_o, target_o, var_o):
    output_o = output_o.astype(jnp.float32)
    target_o = target_o.astype(jnp.float32)
    var_o = var_o.astype(jnp.float32)
    q_10 = target_o - (output_o - var_o)
    q_90 = target_o - (output_o + var_o)
    loss_10 = jnp.maximum(Q1 * q_10, (Q1 - 1.0) * q_10)
    loss_90 = jnp.maximum(Q9 * q_90, (Q9 - 1.0) * q_90)
    return jnp.mean(loss_10) + jnp.mean(loss_90)


if __name__ == "__main__":
    key = jax.random.PRNGKey(0)
    k1, k2, k3 = jax.random.split(key, 3)

    def make_inputs(shape, dtype=jnp.float32):
        o = jax.random.normal(k1, shape, dtype=jnp.float32).astype(dtype)
        t = jax.random.normal(k2, shape, dtype=jnp.float32).astype(dtype)
        v = jax.nn.softplus(
            jax.random.normal(k3, shape, dtype=jnp.float32)).astype(dtype)
        return o, t, v

    # 1) B, C, H, W (NCHW) -> 2048 elements = 16 lane-aligned rows.
    o, t, v = make_inputs((2, 4, 16, 16))
    loss = pinball_loss(o, t, v)
    jax.block_until_ready(loss)
    ref = pinball_loss_ref(o, t, v)
    assert jnp.allclose(loss, ref, rtol=1e-5, atol=1e-6), (loss, ref)

    # 2) Non-lane-aligned shape: masked partial block + <128-elem jnp tail.
    o, t, v = make_inputs((3, 5, 19, 17))
    loss = pinball_loss(o, t, v)
    jax.block_until_ready(loss)
    ref = pinball_loss_ref(o, t, v)
    assert jnp.allclose(loss, ref, rtol=1e-5, atol=1e-6), (loss, ref)

    # 3) Multi-step grid + explicit 2-shard split (both accumulator blocks).
    o, t, v = make_inputs((4, 8, 32, 32))
    loss = pinball_loss(o, t, v, tile_rows=64, num_shards=2)
    jax.block_until_ready(loss)
    ref = pinball_loss_ref(o, t, v)
    assert jnp.allclose(loss, ref, rtol=1e-5, atol=1e-6), (loss, ref)

    # 4) bf16 inputs stream half the bytes; math stays f32 in-kernel.
    o, t, v = make_inputs((2, 4, 16, 16), dtype=jnp.bfloat16)
    loss = pinball_loss(o, t, v)
    jax.block_until_ready(loss)
    ref = pinball_loss_ref(o, t, v)
    assert jnp.allclose(loss, ref, rtol=1e-5, atol=1e-5), (loss, ref)

    # 5) Tiny input (<1024 elements): pure-jnp fallback path.
    o, t, v = make_inputs((2, 3, 7, 5))
    loss = pinball_loss(o, t, v)
    jax.block_until_ready(loss)
    ref = pinball_loss_ref(o, t, v)
    assert jnp.allclose(loss, ref, rtol=1e-5, atol=1e-6), (loss, ref)

    print("KERNEL_OK")
</pallas_src>

<mosaic_0001>
module attributes {stable_mosaic.version = 11 : i64} {
  func.func @kernel(%arg0: i32, %arg1: i32, %arg2: memref<16x128xf32, #tpu.memory_space<vmem>>, %arg3: memref<16x128xf32, #tpu.memory_space<vmem>>, %arg4: memref<16x128xf32, #tpu.memory_space<vmem>>, %arg5: memref<8x128xf32, #tpu.memory_space<vmem>>) attributes {dimension_semantics = [#tpu.dimension_semantics<parallel>, #tpu.dimension_semantics<arbitrary>], iteration_bounds = array<i64: 1, 1>, scalar_prefetch = 0 : i64, scratch_operands = 0 : i64, tpu.core_type = #tpu.core_type<tc>, window_params = [{transform_indices = @transform_0, window_bounds = array<i64: 16, 128>}, {transform_indices = @transform_1, window_bounds = array<i64: 16, 128>}, {transform_indices = @transform_2, window_bounds = array<i64: 16, 128>}, {transform_indices = @transform_3, window_bounds = array<i64: 8, 128>}]} {
    %c0_i32 = arith.constant 0 : i32
    %0 = arith.cmpi eq, %arg1, %c0_i32 : i32
    %1 = arith.extui %0 : i1 to i32
    %c0_i32_0 = arith.constant 0 : i32
    %2 = arith.cmpi ne, %1, %c0_i32_0 : i32
    scf.if %2 {
      %cst_12 = arith.constant 0.000000e+00 : f32
      %22 = vector.broadcast %cst_12 : f32 to vector<8x128xf32>
      %c0_13 = arith.constant 0 : index
      %c0_14 = arith.constant 0 : index
      %23 = vector.load %arg5[%c0_13, %c0_14] : memref<8x128xf32, #tpu.memory_space<vmem>>, vector<8x128xf32>
      tpu.vector_store %arg5[%c0_13, %c0_14], %22 {strides = array<i32>} : memref<8x128xf32, #tpu.memory_space<vmem>>, vector<8x128xf32>,
    } else {
    }
    %c0 = arith.constant 0 : index
    %c0_1 = arith.constant 0 : index
    %3 = vector.load %arg2[%c0, %c0_1] : memref<16x128xf32, #tpu.memory_space<vmem>>, vector<16x128xf32>
    %c0_2 = arith.constant 0 : index
    %c0_3 = arith.constant 0 : index
    %4 = vector.load %arg3[%c0_2, %c0_3] : memref<16x128xf32, #tpu.memory_space<vmem>>, vector<16x128xf32>
    %c0_4 = arith.constant 0 : index
    %c0_5 = arith.constant 0 : index
    %5 = vector.load %arg4[%c0_4, %c0_5] : memref<16x128xf32, #tpu.memory_space<vmem>>, vector<16x128xf32>
    %6 = arith.subf %4, %3 : vector<16x128xf32>
    %7 = arith.addf %6, %5 : vector<16x128xf32>
    %8 = math.absf %7 : vector<16x128xf32>
    %9 = arith.subf %6, %5 : vector<16x128xf32>
    %10 = math.absf %9 : vector<16x128xf32>
    %11 = arith.addf %8, %10 : vector<16x128xf32>
    %cst = arith.constant 5.000000e-01 : f32
    %12 = vector.broadcast %cst : f32 to vector<16x128xf32>
    %13 = arith.mulf %12, %11 : vector<16x128xf32>
    %cst_6 = arith.constant 8.000000e-01 : f32
    %14 = vector.broadcast %cst_6 : f32 to vector<16x128xf32>
    %15 = arith.mulf %14, %5 : vector<16x128xf32>
    %16 = arith.subf %13, %15 : vector<16x128xf32>
    %c0_7 = arith.constant 0 : index
    %c0_8 = arith.constant 0 : index
    %17 = vector.load %arg5[%c0_7, %c0_8] : memref<8x128xf32, #tpu.memory_space<vmem>>, vector<8x128xf32>
    %18 = vector.shape_cast %16 : vector<16x128xf32> to vector<2x8x128xf32>
    %cst_9 = arith.constant dense<0.000000e+00> : vector<8x128xf32>
    %19 = vector.multi_reduction <add>, %18, %cst_9 [0] : vector<2x8x128xf32> to vector<8x128xf32>
    %20 = arith.addf %17, %19 : vector<8x128xf32>
    %c0_10 = arith.constant 0 : index
    %c0_11 = arith.constant 0 : index
    %21 = vector.load %arg5[%c0_10, %c0_11] : memref<8x128xf32, #tpu.memory_space<vmem>>, vector<8x128xf32>
    tpu.vector_store %arg5[%c0_10, %c0_11], %20 {strides = array<i32>} : memref<8x128xf32, #tpu.memory_space<vmem>>, vector<8x128xf32>,
    return
  }
  func.func @transform_0(%arg0: i32, %arg1: i32) -> (i32, i32) {
    %c1_i32 = arith.constant 1 : i32
    %0 = arith.muli %arg0, %c1_i32 : i32
    %1 = arith.addi %0, %arg1 : i32
    %c0_i32 = arith.constant 0 : i32
    %c0_i32_0 = arith.constant 0 : i32
    return %1, %c0_i32 : i32, i32
  }
  func.func @transform_1(%arg0: i32, %arg1: i32) -> (i32, i32) {
    %c1_i32 = arith.constant 1 : i32
    %0 = arith.muli %arg0, %c1_i32 : i32
    %1 = arith.addi %0, %arg1 : i32
    %c0_i32 = arith.constant 0 : i32
    %c0_i32_0 = arith.constant 0 : i32
    return %1, %c0_i32 : i32, i32
  }
  func.func @transform_2(%arg0: i32, %arg1: i32) -> (i32, i32) {
    %c1_i32 = arith.constant 1 : i32
    %0 = arith.muli %arg0, %c1_i32 : i32
    %1 = arith.addi %0, %arg1 : i32
    %c0_i32 = arith.constant 0 : i32
    %c0_i32_0 = arith.constant 0 : i32
    return %1, %c0_i32 : i32, i32
  }
  func.func @transform_3(%arg0: i32, %arg1: i32) -> (i32, i32) {
    %c0_i32 = arith.constant 0 : i32
    %c0_i32_0 = arith.constant 0 : i32
    return %arg0, %c0_i32 : i32, i32
  }
}

</mosaic_0001>

<llo_original>
// kernel: tpu_custom_call.1
$region0: #{tpu_custom_call.1}
  #allocation0 [shape = 'u32[]', space=smem, size = 0x4, offset = 0x4, fixed_abs, tag = 'smem constant byte address 0x4 - core index']
  #allocation1 [shape = 'u32[144,128]{1,0:T(1,128)}', space=vmem, size = 0x12000, scoped, tag = 'internal scratch']
  %s0 = inlined_call_operand.hbm [shape: f32[16,128], index: 0, kind: input, shape index: {}]
  %s1 = inlined_call_operand.hbm [shape: f32[16,128], index: 1, kind: input, shape index: {}]
  %s2 = inlined_call_operand.hbm [shape: f32[16,128], index: 2, kind: input, shape index: {}]
  %s3 = inlined_call_operand.hbm [shape: f32[8,128], index: 3, kind: output, shape index: {}]
  %s4 = sld [smem:[#allocation0]]
  $region38: #{tpu_custom_call.1} parent=0
    _
  %s6 = ssub.s32 1, %s4
  %s7 = scalar_select 0, %s6, %s4
  $region1: #{tpu_custom_call.1} parent=0
    #allocation2 [shape = 'u8[8192]{0}', space=vmem, size = 0x2000, scoped, tag = 'input window, operand 0, single buffered']
    #allocation3 [shape = 's32[1]{0}', space=sflag, size = 0x4, scoped, tag = 'scoped memory for tpu_custom_call.1']
    #allocation4 [shape = 's32[1]{0}', space=sflag, size = 0x4, scoped, tag = 'scoped memory for tpu_custom_call.1']
    #allocation5 [shape = 'u8[8192]{0}', space=vmem, size = 0x2000, scoped, tag = 'input window, operand 1, single buffered']
    #allocation6 [shape = 's32[1]{0}', space=sflag, size = 0x4, scoped, tag = 'scoped memory for tpu_custom_call.1']
    #allocation7 [shape = 'u8[8192]{0}', space=vmem, size = 0x2000, scoped, tag = 'input window, operand 2, single buffered']
    #allocation8 [shape = 'u8[4096]{0}', space=vmem, size = 0x1000, scoped, tag = 'output window, operand 0, single buffered']
    %8 = vsyncpa [#allocation3], 0
    %9 = vsyncpa [#allocation6], 0
    %10 = vsyncpa [#allocation4], 0
    // Predicated region
    $region2: #{tpu_custom_call.1} parent=1 // pred_check
      _
    $region3: #{tpu_custom_call.1} parent=1 // pred_check_branch
      %12 = sbr.rel (0) target = $region5
    $region4: #{tpu_custom_call.1} parent=1 // pred_region
      %s13 = sadd.s32 0, 0
      %s14 = smul.u32 2, %s13
      %s16 = ssub.s32 256, 256
      %17 = vsyncadd [#allocation3], %s16
      %s18 = smul.addr %s14, 128
      %s19 = scalar_lea.hbm %s0, %s18
      %s20 = sshll.u32 [#allocation2], 4
      %s21 = int_to_ptr.vmem [resolvable:$true] %s20
      %26 = dma.hbm_to_vmem [thread:$0]  %s19, 256, %s21, [#allocation3], 128, 128, 8
    $region5: #{tpu_custom_call.1} parent=1 // pred_fallthru
      _
    // Predicated region
    $region6: #{tpu_custom_call.1} parent=1 // pred_check
      _
    $region7: #{tpu_custom_call.1} parent=1 // pred_check_branch
      %28 = sbr.rel (0) target = $region9
    $region8: #{tpu_custom_call.1} parent=1 // pred_region
      %s29 = sadd.s32 0, 0
      %s30 = smul.u32 2, %s29
      %s32 = ssub.s32 256, 256
      %33 = vsyncadd [#allocation6], %s32
      %s34 = smul.addr %s30, 128
      %s35 = scalar_lea.hbm %s1, %s34
      %s36 = sshll.u32 [#allocation5], 4
      %s37 = int_to_ptr.vmem [resolvable:$true] %s36
      %42 = dma.hbm_to_vmem [thread:$0]  %s35, 256, %s37, [#allocation6], 128, 128, 8
    $region9: #{tpu_custom_call.1} parent=1 // pred_fallthru
      _
    // Predicated region
    $region10: #{tpu_custom_call.1} parent=1 // pred_check
      _
    $region11: #{tpu_custom_call.1} parent=1 // pred_check_branch
      %44 = sbr.rel (0) target = $region13
    $region12: #{tpu_custom_call.1} parent=1 // pred_region
      %s45 = sadd.s32 0, 0
      %s46 = smul.u32 2, %s45
      %s48 = ssub.s32 256, 256
      %49 = vsyncadd [#allocation6], %s48
      %s50 = smul.addr %s46, 128
      %s51 = scalar_lea.hbm %s2, %s50
      %s52 = sshll.u32 [#allocation7], 4
      %s53 = int_to_ptr.vmem [resolvable:$true] %s52
      %58 = dma.hbm_to_vmem [thread:$0]  %s51, 256, %s53, [#allocation6], 128, 128, 8
    $region13: #{tpu_custom_call.1} parent=1 // pred_fallthru
      _
    // Predicated region
    $region14: #{tpu_custom_call.1} parent=1 // pred_check
      _
    $region15: #{tpu_custom_call.1} parent=1 // pred_check_branch
      %60 = sbr.rel (0) target = $region17
    $region16: #{tpu_custom_call.1} parent=1 // pred_region
      %61 = dma.done [#allocation3], 256
    $region17: #{tpu_custom_call.1} parent=1 // pred_fallthru
      _
    // Predicated region
    $region18: #{tpu_custom_call.1} parent=1 // pred_check
      _
    $region19: #{tpu_custom_call.1} parent=1 // pred_check_branch
      %63 = sbr.rel (0) target = $region21
    $region20: #{tpu_custom_call.1} parent=1 // pred_region
      %64 = dma.done [#allocation6], 256
    $region21: #{tpu_custom_call.1} parent=1 // pred_fallthru
      _
    // Predicated region
    $region22: #{tpu_custom_call.1} parent=1 // pred_check
      _
    $region23: #{tpu_custom_call.1} parent=1 // pred_check_branch
      %66 = sbr.rel (0) target = $region25
    $region24: #{tpu_custom_call.1} parent=1 // pred_region
      %67 = dma.done [#allocation6], 256
    $region25: #{tpu_custom_call.1} parent=1 // pred_fallthru
      _
    %s68 = sadd.s32 0, 0
    %s69 = smul.u32 2, %s68
    %s70 = sadd.s32 0, 0
    %s71 = smul.u32 2, %s70
    %s72 = sadd.s32 0, 0
    %s73 = smul.u32 2, %s72
    %p74 = scmp.eq.s32.totalorder 0, 0
    // Predicated region
    $region26: #{tpu_custom_call.1} parent=1 // pred_check
      %p75 = pneg %p74
    $region27: #{tpu_custom_call.1} parent=1 // pred_check_branch
      %77 = sbr.rel (%p75) target = $region29
    $region28: #{tpu_custom_call.1} parent=1 // pred_region
      %78 = vst [vmem:[#allocation8] sm:$0xff] 0.0
    $region29: #{tpu_custom_call.1} parent=1 // pred_fallthru
      _
    %v79 = vld [vmem:[#allocation2] sm:$0xff]
    %v80 = vld [vmem:[#allocation2 + $0x8] sm:$0xff]
    %v81 = vld [vmem:[#allocation5] sm:$0xff]
    %v82 = vld [vmem:[#allocation5 + $0x8] sm:$0xff]
    %v83 = vld [vmem:[#allocation7] sm:$0xff]
    %v84 = vld [vmem:[#allocation7 + $0x8] sm:$0xff]
    %v85 = vsub.f32 %v81, %v79
    %v86 = vsub.f32 %v82, %v80
    %v87 = vadd.f32 %v85, %v83
    %v88 = vadd.f32 %v86, %v84
    %v89 = vand.u32 2147483647, %v87
    %v90 = vand.u32 2147483647, %v88
    %v91 = vsub.f32 %v85, %v83
    %v92 = vsub.f32 %v86, %v84
    %v93 = vand.u32 2147483647, %v91
    %v94 = vand.u32 2147483647, %v92
    %v95 = vadd.f32 %v89, %v93
    %v96 = vadd.f32 %v90, %v94
    %v97 = vmul.f32 %v95, 0.5
    %v98 = vmul.f32 %v96, 0.5
    %v99 = vmul.f32 %v83, 0.8
    %v100 = vmul.f32 %v84, 0.8
    %v101 = vsub.f32 %v97, %v99
    %v102 = vsub.f32 %v98, %v100
    %v103 = vld [vmem:[#allocation8] sm:$0xff]
    %v104 = vadd.f32 %v101, %v102
    %v105 = vadd.f32 %v103, %v104
    %106 = vst [vmem:[#allocation8] sm:$0xff] %v105
    // Predicated region
    $region30: #{tpu_custom_call.1} parent=1 // pred_check
      _
    $region31: #{tpu_custom_call.1} parent=1 // pred_check_branch
      %108 = sbr.rel (0) target = $region33
    $region32: #{tpu_custom_call.1} parent=1 // pred_region
      %s110 = ssub.s32 128, 128
      %111 = vsyncadd [#allocation4], %s110
      %s113 = sshll.u32 [#allocation8], 4
      %s114 = int_to_ptr.vmem [resolvable:$true] %s113
      %116 = dma.vmem_to_hbm [thread:$0]  %s114, 128, %s3, [#allocation4]
    $region33: #{tpu_custom_call.1} parent=1 // pred_fallthru
      _
    // Predicated region
    $region34: #{tpu_custom_call.1} parent=1 // pred_check
      _
    $region35: #{tpu_custom_call.1} parent=1 // pred_check_branch
      %118 = sbr.rel (0) target = $region37
    $region36: #{tpu_custom_call.1} parent=1 // pred_region
      %119 = dma.done [#allocation4], 128
    $region37: #{tpu_custom_call.1} parent=1 // pred_fallthru
      _
    %120 = vsyncpa [#allocation3], 1
    %121 = vsyncpa [#allocation6], 1
    %122 = vsyncpa [#allocation4], 1

</llo_original>
